<compile_context>
chip_gen: v7x
topology: tpu7x:2x2x1
jax: 0.10.0
libtpu: 0.0.40
codegen_flags: <defaults>
</compile_context>

<pallas_src>
import functools

import jax
import jax.numpy as jnp
from jax import lax
from jax.experimental import pallas as pl
from jax.experimental.pallas import tpu as pltpu

# Static module parameters (from __init__ defaults; `inplace` has no numerical effect).
ALPHA = 0.0
MAX_VALUE = None
THRESHOLD = 0.0

_LANES = 128


def _assert_static_scalar(name, v):
    if v is not None and not isinstance(v, (bool, int, float)):
        raise TypeError(
            f"ComplexGeLU parameter '{name}' must be a static Python scalar "
            f"(it is branch-elided at trace time); got {type(v)}"
        )


def _target_tile_rows():
    """Largest safe block row count per TPU generation (2 in + 2 out, double-buffered)."""
    try:
        kind = jax.devices()[0].device_kind.lower()
    except Exception:  # pragma: no cover - defensive
        return 2048
    if "v6" in kind or "v7" in kind:
        return 4096  # 2 MiB/block/ref -> 16 MiB double-buffered, within 32 MiB scoped VMEM
    return 2048      # 1 MiB/block/ref -> 8 MiB double-buffered, safe on v5e's 16 MiB default


def _pick_block_rows(rows):
    """Biggest tile that fits VMEM while guaranteeing >= 2 grid blocks (keeps both v7x TCs busy)."""
    if rows < 16:
        return rows  # full-array block (allowed: equals full dims)
    half = pl.cdiv(rows, 2)
    half = ((half + 7) // 8) * 8  # block rows must be a multiple of 8 when < full extent
    return min(_target_tile_rows(), half)


def _gelu_branch(x, threshold, alpha, max_value, approximate):
    """GeLU with the threshold / alpha / max_value semantics of ComplexGeLU."""
    xs = x - threshold if threshold != 0 else x
    if approximate:
        # tanh approximation: runs on the EUP slot (v7x VALU relief). Differs from exact
        # F.gelu by ~1e-3 worst case; off by default.
        c = 0.7978845608028654  # sqrt(2/pi)
        g = 0.5 * xs * (1.0 + jnp.tanh(c * (xs + 0.044715 * (xs * xs * xs))))
    else:
        # F.gelu default: 0.5 * x * (1 + erf(x / sqrt(2)))
        g = 0.5 * xs * (1.0 + lax.erf(xs * 0.7071067811865476))
    if threshold != 0:
        g = g + threshold
    if alpha != 0:
        g = jnp.where(x < threshold, alpha * (x - threshold), g)
    if max_value is not None:
        g = jnp.minimum(g, max_value)
    return g


def _gelu_kernel(r_ref, i_ref, ro_ref, io_ref, *, threshold, alpha, max_value, approximate):
    ro_ref[...] = _gelu_branch(r_ref[...], threshold, alpha, max_value, approximate)
    io_ref[...] = _gelu_branch(i_ref[...], threshold, alpha, max_value, approximate)


def complex_gelu_planar(real, imag, *, alpha=ALPHA, max_value=MAX_VALUE,
                        threshold=THRESHOLD, approximate=False):
    """ComplexGeLU on planar (real, imag) f32 activations. Zero conversion overhead path.

    Returns (real_out, imag_out) with the same shape as the inputs.
    """
    _assert_static_scalar("alpha", alpha)
    _assert_static_scalar("max_value", max_value)
    _assert_static_scalar("threshold", threshold)
    assert real.shape == imag.shape, "real/imag planes must share a shape"

    orig_shape = real.shape
    r = real.astype(jnp.float32).reshape(-1)
    i = imag.astype(jnp.float32).reshape(-1)
    total = r.shape[0]

    # Lane-dense 2-D slab. Conv activations are virtually always divisible by 128; the
    # pad path is a rare fallback for odd shapes.
    rem = total % _LANES
    padded = rem != 0
    if padded:
        pad = _LANES - rem
        r = jnp.pad(r, (0, pad))
        i = jnp.pad(i, (0, pad))
    rows = r.shape[0] // _LANES
    r2 = r.reshape(rows, _LANES)
    i2 = i.reshape(rows, _LANES)

    block_rows = _pick_block_rows(rows)
    grid = (pl.cdiv(rows, block_rows),)
    spec = pl.BlockSpec((block_rows, _LANES), lambda b: (b, 0))

    kernel = functools.partial(
        _gelu_kernel, threshold=threshold, alpha=alpha, max_value=max_value,
        approximate=approximate,
    )

    n_elem = rows * _LANES
    cost = pl.CostEstimate(
        flops=2 * n_elem * 12,            # ~12 VALU ops / element / plane (excl. erf)
        transcendentals=2 * n_elem,       # one erf (or tanh) per element per plane
        bytes_accessed=4 * n_elem * 4,    # 2 inputs + 2 outputs, f32
    )

    ro, io = pl.pallas_call(
        kernel,
        out_shape=(
            jax.ShapeDtypeStruct((rows, _LANES), jnp.float32),
            jax.ShapeDtypeStruct((rows, _LANES), jnp.float32),
        ),
        grid=grid,
        in_specs=[spec, spec],
        out_specs=(spec, spec),
        compiler_params=pltpu.CompilerParams(dimension_semantics=("parallel",)),
        cost_estimate=cost,
    )(r2, i2)

    ro = ro.reshape(-1)
    io = io.reshape(-1)
    if padded:
        ro = ro[:total]
        io = io[:total]
    return ro.reshape(orig_shape), io.reshape(orig_shape)


def complex_gelu(z, *, alpha=ALPHA, max_value=MAX_VALUE, threshold=THRESHOLD,
                 approximate=False):
    """ComplexGeLU forward matching the PyTorch module. z: complex64 array (e.g. NCHW)."""
    # TODO(synk): if the surrounding model stores activations as planar real/imag, call
    # complex_gelu_planar directly and skip this complex64 <-> planar conversion entirely.
    r, i = complex_gelu_planar(
        jnp.real(z), jnp.imag(z),
        alpha=alpha, max_value=max_value, threshold=threshold, approximate=approximate,
    )
    return lax.complex(r, i)


def complex_gelu_ref(z, *, alpha=ALPHA, max_value=MAX_VALUE, threshold=THRESHOLD):
    """Pure-JAX reference mirroring the PyTorch forward (exact erf GeLU)."""
    rg = _gelu_branch(jnp.real(z), threshold, alpha, max_value, approximate=False)
    ig = _gelu_branch(jnp.imag(z), threshold, alpha, max_value, approximate=False)
    return lax.complex(rg, ig)


if __name__ == "__main__":
    key = jax.random.PRNGKey(0)

    # Main test: NCHW complex64, matching the PyTorch conv-style layout.
    N, C, H, W = 2, 4, 16, 16
    k1, k2, k3, k4 = jax.random.split(key, 4)
    re = jax.random.normal(k1, (N, C, H, W), dtype=jnp.float32)
    im = jax.random.normal(k2, (N, C, H, W), dtype=jnp.float32)
    z = lax.complex(re, im)

    out = jax.block_until_ready(complex_gelu(z))
    ref = complex_gelu_ref(z)
    assert out.shape == z.shape and out.dtype == jnp.complex64
    assert jnp.allclose(jnp.real(out), jnp.real(ref), atol=1e-5, rtol=1e-5)
    assert jnp.allclose(jnp.imag(out), jnp.imag(ref), atol=1e-5, rtol=1e-5)

    # Planar fast path (no complex pack/unpack at all).
    ro, io = complex_gelu_planar(re, im)
    jax.block_until_ready((ro, io))
    assert jnp.allclose(ro, jnp.real(ref), atol=1e-5, rtol=1e-5)
    assert jnp.allclose(io, jnp.imag(ref), atol=1e-5, rtol=1e-5)

    # Odd shape exercising the (rare) pad fallback path.
    z2 = lax.complex(
        jax.random.normal(k3, (1, 3, 7, 5), dtype=jnp.float32),
        jax.random.normal(k4, (1, 3, 7, 5), dtype=jnp.float32),
    )
    out2 = jax.block_until_ready(complex_gelu(z2))
    ref2 = complex_gelu_ref(z2)
    assert jnp.allclose(jnp.real(out2), jnp.real(ref2), atol=1e-5, rtol=1e-5)
    assert jnp.allclose(jnp.imag(out2), jnp.imag(ref2), atol=1e-5, rtol=1e-5)

    # Optional tanh-approximate path (v7x VALU relief) — looser tolerance vs exact ref.
    out3 = jax.block_until_ready(complex_gelu(z, approximate=True))
    assert jnp.allclose(jnp.real(out3), jnp.real(ref), atol=5e-3, rtol=5e-3)
    assert jnp.allclose(jnp.imag(out3), jnp.imag(ref), atol=5e-3, rtol=5e-3)

    print("KERNEL_OK")
</pallas_src>

<mosaic_0001>
module attributes {stable_mosaic.version = 11 : i64} {
  func.func @_gelu_kernel(%arg0: i32, %arg1: memref<8x128xf32, #tpu.memory_space<vmem>>, %arg2: memref<8x128xf32, #tpu.memory_space<vmem>>, %arg3: memref<8x128xf32, #tpu.memory_space<vmem>>, %arg4: memref<8x128xf32, #tpu.memory_space<vmem>>) attributes {dimension_semantics = [#tpu.dimension_semantics<parallel>], iteration_bounds = array<i64: 2>, scalar_prefetch = 0 : i64, scratch_operands = 0 : i64, tpu.core_type = #tpu.core_type<tc>, window_params = [{transform_indices = @transform_0, window_bounds = array<i64: 8, 128>}, {transform_indices = @transform_1, window_bounds = array<i64: 8, 128>}, {transform_indices = @transform_2, window_bounds = array<i64: 8, 128>}, {transform_indices = @transform_3, window_bounds = array<i64: 8, 128>}]} {
    %c0 = arith.constant 0 : index
    %c0_0 = arith.constant 0 : index
    %0 = vector.load %arg1[%c0, %c0_0] : memref<8x128xf32, #tpu.memory_space<vmem>>, vector<8x128xf32>
    %cst = arith.constant 5.000000e-01 : f32
    %1 = vector.broadcast %cst : f32 to vector<8x128xf32>
    %2 = arith.mulf %1, %0 : vector<8x128xf32>
    %cst_1 = arith.constant 0.707106769 : f32
    %3 = vector.broadcast %cst_1 : f32 to vector<8x128xf32>
    %4 = arith.mulf %0, %3 : vector<8x128xf32>
    %5 = math.erf %4 : vector<8x128xf32>
    %cst_2 = arith.constant 1.000000e+00 : f32
    %6 = vector.broadcast %cst_2 : f32 to vector<8x128xf32>
    %7 = arith.addf %6, %5 : vector<8x128xf32>
    %8 = arith.mulf %2, %7 : vector<8x128xf32>
    %c0_3 = arith.constant 0 : index
    %c0_4 = arith.constant 0 : index
    %9 = vector.load %arg3[%c0_3, %c0_4] : memref<8x128xf32, #tpu.memory_space<vmem>>, vector<8x128xf32>
    tpu.vector_store %arg3[%c0_3, %c0_4], %8 {strides = array<i32>} : memref<8x128xf32, #tpu.memory_space<vmem>>, vector<8x128xf32>,
    %c0_5 = arith.constant 0 : index
    %c0_6 = arith.constant 0 : index
    %10 = vector.load %arg2[%c0_5, %c0_6] : memref<8x128xf32, #tpu.memory_space<vmem>>, vector<8x128xf32>
    %cst_7 = arith.constant 5.000000e-01 : f32
    %11 = vector.broadcast %cst_7 : f32 to vector<8x128xf32>
    %12 = arith.mulf %11, %10 : vector<8x128xf32>
    %cst_8 = arith.constant 0.707106769 : f32
    %13 = vector.broadcast %cst_8 : f32 to vector<8x128xf32>
    %14 = arith.mulf %10, %13 : vector<8x128xf32>
    %15 = math.erf %14 : vector<8x128xf32>
    %cst_9 = arith.constant 1.000000e+00 : f32
    %16 = vector.broadcast %cst_9 : f32 to vector<8x128xf32>
    %17 = arith.addf %16, %15 : vector<8x128xf32>
    %18 = arith.mulf %12, %17 : vector<8x128xf32>
    %c0_10 = arith.constant 0 : index
    %c0_11 = arith.constant 0 : index
    %19 = vector.load %arg4[%c0_10, %c0_11] : memref<8x128xf32, #tpu.memory_space<vmem>>, vector<8x128xf32>
    tpu.vector_store %arg4[%c0_10, %c0_11], %18 {strides = array<i32>} : memref<8x128xf32, #tpu.memory_space<vmem>>, vector<8x128xf32>,
    return
  }
  func.func @transform_0(%arg0: i32) -> (i32, i32) {
    %c0_i32 = arith.constant 0 : i32
    %c0_i32_0 = arith.constant 0 : i32
    return %arg0, %c0_i32 : i32, i32
  }
  func.func @transform_1(%arg0: i32) -> (i32, i32) {
    %c0_i32 = arith.constant 0 : i32
    %c0_i32_0 = arith.constant 0 : i32
    return %arg0, %c0_i32 : i32, i32
  }
  func.func @transform_2(%arg0: i32) -> (i32, i32) {
    %c0_i32 = arith.constant 0 : i32
    %c0_i32_0 = arith.constant 0 : i32
    return %arg0, %c0_i32 : i32, i32
  }
  func.func @transform_3(%arg0: i32) -> (i32, i32) {
    %c0_i32 = arith.constant 0 : i32
    %c0_i32_0 = arith.constant 0 : i32
    return %arg0, %c0_i32 : i32, i32
  }
}

</mosaic_0001>

<llo_original>
// kernel: tpu_custom_call.1
$region0: #{tpu_custom_call.1}
  #allocation0 [shape = 'u32[]', space=smem, size = 0x4, offset = 0x4, fixed_abs, tag = 'smem constant byte address 0x4 - core index']
  #allocation1 [shape = 'u32[144,128]{1,0:T(1,128)}', space=vmem, size = 0x12000, scoped, tag = 'internal scratch']
  %s0 = inlined_call_operand.hbm [shape: f32[16,128], index: 0, kind: input, shape index: {}]
  %s1 = inlined_call_operand.hbm [shape: f32[16,128], index: 1, kind: input, shape index: {}]
  %s2 = inlined_call_operand.hbm [shape: f32[16,128], index: 2, kind: output, shape index: {0}]
  %s3 = inlined_call_operand.hbm [shape: f32[16,128], index: 3, kind: output, shape index: {1}]
  %4 = xla_tuple %s2, %s3
  %s5 = sld [smem:[#allocation0]]
  $region57: #{tpu_custom_call.1} parent=0
    _
  %s7 = ssub.s32 1, %s5
  %s8 = scalar_select 0, %s7, %s5
  $region1: #{tpu_custom_call.1} parent=0
    #allocation2 [shape = 'u8[8192]{0}', space=vmem, size = 0x2000, scoped, tag = 'input window, operand 0']
    #allocation3 [shape = 's32[2]{0}', space=sflag, size = 0x8, scoped, tag = 'scoped memory for tpu_custom_call.1']
    #allocation4 [shape = 's32[2]{0}', space=sflag, size = 0x8, scoped, tag = 'scoped memory for tpu_custom_call.1']
    #allocation5 [shape = 'u8[8192]{0}', space=vmem, size = 0x2000, scoped, tag = 'input window, operand 1']
    #allocation6 [shape = 's32[2]{0}', space=sflag, size = 0x8, scoped, tag = 'scoped memory for tpu_custom_call.1']
    #allocation7 [shape = 'u8[8192]{0}', space=vmem, size = 0x2000, scoped, tag = 'output window, operand 0']
    #allocation8 [shape = 'u8[8192]{0}', space=vmem, size = 0x2000, scoped, tag = 'output window, operand 1']
    #allocation9 [shape = 's32[2]{0}', space=sflag, size = 0x8, scoped, tag = 'scoped memory for tpu_custom_call.1']
    %9 = vsyncpa [#allocation3], 0
    %s10 = scalar_lea.sflag [#allocation3], 1
    %11 = vsyncpa %s10, 0
    %12 = vsyncpa [#allocation6], 0
    %s13 = scalar_lea.sflag [#allocation6], 1
    %14 = vsyncpa %s13, 0
    %15 = vsyncpa [#allocation4], 0
    %s16 = scalar_lea.sflag [#allocation4], 1
    %17 = vsyncpa %s16, 0
    %18 = vsyncpa [#allocation9], 0
    %s19 = scalar_lea.sflag [#allocation9], 1
    %20 = vsyncpa %s19, 0
    loop: start=0, step=1, limit=4
    $region2: #{tpu_custom_call.1} parent=1 // loop_pre_header
      _
    $region3: #{tpu_custom_call.1} parent=1 // loop_header
      %s22 = sphi 0, %s26
      %p23 = scmp.ge.s32.totalorder %s22, 4
      %s32 = sphi 0, %s34
      %s35 = sphi 0, %s32
      %s36 = sphi 0, %s35
      %s52 = sphi 0, %s36
      %s58 = sphi 0, %s60
      %s61 = sphi 0, %s58
      %s62 = sphi 0, %s61
      %s78 = sphi 0, %s62
      %s84 = sphi 0, %s86
      %s87 = sphi 0, %s84
      %s88 = sphi 0, %s87
      %s104 = sphi 0, %s88
      %s110 = sphi 0, %s112
      %s113 = sphi 0, %s110
      %s114 = sphi 0, %s113
      %s130 = sphi 0, %s114
    $region4: #{tpu_custom_call.1} parent=1 // loop_header_branch
      %25 = sbr.rel (%p23) target = $region8
    $region5: #{tpu_custom_call.1} parent=1 // loop_body
      %s27 = ssub.s32 %s22, 1
      %s28 = ssub.s32 %s22, 2
      %s29 = sadd.s32 %s22, 1
      %s30 = ssub.s32 %s22, %s29
      %p31 = scmp.eq.s32.totalorder %s30, 0
      %s33 = sadd.s32 %s32, 1
      %s34 = scalar_select %p31, %s32, %s33
      %p37 = pneg %p31
      %p38 = scmp.eq.s32.totalorder %s22, 1
      %p39 = por %p37, %p38
      %p40 = scmp.ne.s32.totalorder %s32, %s35
      %p41 = scmp.eq.s32.totalorder %s22, 0
      %p42 = por %p40, %p41
      %p43 = scmp.ne.s32.totalorder %s32, %s35
      %p44 = scmp.eq.s32.totalorder %s27, 1
      %p45 = por %p43, %p44
      %p46 = scmp.ne.s32.totalorder %s35, %s36
      %p47 = scmp.eq.s32.totalorder %s27, 0
      %p48 = por %p46, %p47
      %p49 = scmp.ne.s32.totalorder %s35, %s36
      %p50 = scmp.eq.s32.totalorder %s28, 1
      %p51 = por %p49, %p50
      %p53 = scmp.ne.s32.totalorder %s36, %s52
      %p54 = scmp.eq.s32.totalorder %s28, 0
      %p55 = por %p53, %p54
      %s56 = ssub.s32 %s22, %s29
      %p57 = scmp.eq.s32.totalorder %s56, 0
      %s59 = sadd.s32 %s58, 1
      %s60 = scalar_select %p57, %s58, %s59
      %p63 = pneg %p57
      %p64 = scmp.eq.s32.totalorder %s22, 1
      %p65 = por %p63, %p64
      %p66 = scmp.ne.s32.totalorder %s58, %s61
      %p67 = scmp.eq.s32.totalorder %s22, 0
      %p68 = por %p66, %p67
      %p69 = scmp.ne.s32.totalorder %s58, %s61
      %p70 = scmp.eq.s32.totalorder %s27, 1
      %p71 = por %p69, %p70
      %p72 = scmp.ne.s32.totalorder %s61, %s62
      %p73 = scmp.eq.s32.totalorder %s27, 0
      %p74 = por %p72, %p73
      %p75 = scmp.ne.s32.totalorder %s61, %s62
      %p76 = scmp.eq.s32.totalorder %s28, 1
      %p77 = por %p75, %p76
      %p79 = scmp.ne.s32.totalorder %s62, %s78
      %p80 = scmp.eq.s32.totalorder %s28, 0
      %p81 = por %p79, %p80
      %s82 = ssub.s32 %s22, %s29
      %p83 = scmp.eq.s32.totalorder %s82, 0
      %s85 = sadd.s32 %s84, 1
      %s86 = scalar_select %p83, %s84, %s85
      %p89 = pneg %p83
      %p90 = scmp.eq.s32.totalorder %s22, 1
      %p91 = por %p89, %p90
      %p92 = scmp.ne.s32.totalorder %s84, %s87
      %p93 = scmp.eq.s32.totalorder %s22, 0
      %p94 = por %p92, %p93
      %p95 = scmp.ne.s32.totalorder %s84, %s87
      %p96 = scmp.eq.s32.totalorder %s27, 1
      %p97 = por %p95, %p96
      %p98 = scmp.ne.s32.totalorder %s87, %s88
      %p99 = scmp.eq.s32.totalorder %s27, 0
      %p100 = por %p98, %p99
      %p101 = scmp.ne.s32.totalorder %s87, %s88
      %p102 = scmp.eq.s32.totalorder %s28, 1
      %p103 = por %p101, %p102
      %p105 = scmp.ne.s32.totalorder %s88, %s104
      %p106 = scmp.eq.s32.totalorder %s28, 0
      %p107 = por %p105, %p106
      %s108 = ssub.s32 %s22, %s29
      %p109 = scmp.eq.s32.totalorder %s108, 0
      %s111 = sadd.s32 %s110, 1
      %s112 = scalar_select %p109, %s110, %s111
      %p115 = pneg %p109
      %p116 = scmp.eq.s32.totalorder %s22, 1
      %p117 = por %p115, %p116
      %p118 = scmp.ne.s32.totalorder %s110, %s113
      %p119 = scmp.eq.s32.totalorder %s22, 0
      %p120 = por %p118, %p119
      %p121 = scmp.ne.s32.totalorder %s110, %s113
      %p122 = scmp.eq.s32.totalorder %s27, 1
      %p123 = por %p121, %p122
      %p124 = scmp.ne.s32.totalorder %s113, %s114
      %p125 = scmp.eq.s32.totalorder %s27, 0
      %p126 = por %p124, %p125
      %p127 = scmp.ne.s32.totalorder %s113, %s114
      %p128 = scmp.eq.s32.totalorder %s28, 1
      %p129 = por %p127, %p128
      %p131 = scmp.ne.s32.totalorder %s114, %s130
      %p132 = scmp.eq.s32.totalorder %s28, 0
      %p133 = por %p131, %p132
      %p134 = scmp.le.s32.totalorder 1, %s22
      %p135 = scmp.lt.s32.totalorder %s22, 3
      %p136 = pnand %p134, %p135
      %p137 = pneg %p136
      // Predicated region
      $region9: #{tpu_custom_call.1} parent=5 // pred_check
        _
      $region10: #{tpu_custom_call.1} parent=5 // pred_check_branch
        %139 = sbr.rel (%p136) target = $region12
      $region11: #{tpu_custom_call.1} parent=5 // pred_region
        %s140 = ssub.s32 %s22, 1
      $region12: #{tpu_custom_call.1} parent=5 // pred_fallthru
        _
      %p141 = scmp.lt.s32.totalorder %s22, 2
      // Predicated region
      $region13: #{tpu_custom_call.1} parent=5 // pred_check
        %p142 = pneg %p141
      $region14: #{tpu_custom_call.1} parent=5 // pred_check_branch
        %144 = sbr.rel (%p142) target = $region16
      $region15: #{tpu_custom_call.1} parent=5 // pred_region
        // Predicated region
        $region17: #{tpu_custom_call.1} parent=15 // pred_check
          %p145 = pneg %p42
        $region18: #{tpu_custom_call.1} parent=15 // pred_check_branch
          %147 = sbr.rel (%p145) target = $region20
        $region19: #{tpu_custom_call.1} parent=15 // pred_region
          %s148 = sand.u32 %s32, 1
          %s149 = scalar_lea.sflag [#allocation3], %s148
          %s150 = sand.u32 %s32, 1
          %s151 = smul.addr %s150, 8
          %s152 = scalar_lea.vmem [#allocation2], %s151
          %s154 = ssub.s32 128, 128
          %155 = vsyncadd %s149, %s154
          %s156 = smul.addr %s22, 128
          %s157 = scalar_lea.hbm %s0, %s156
          %s159 = sshll.u32 %s152, 4
          %s160 = int_to_ptr.vmem [resolvable:$true] %s159
          %162 = dma.hbm_to_vmem [thread:$0]  %s157, 128, %s160, %s149
        $region20: #{tpu_custom_call.1} parent=15 // pred_fallthru
          _
        // Predicated region
        $region21: #{tpu_custom_call.1} parent=15 // pred_check
          %p163 = pneg %p68
        $region22: #{tpu_custom_call.1} parent=15 // pred_check_branch
          %165 = sbr.rel (%p163) target = $region24
        $region23: #{tpu_custom_call.1} parent=15 // pred_region
          %s166 = sand.u32 %s58, 1
          %s167 = scalar_lea.sflag [#allocation6], %s166
          %s168 = sand.u32 %s58, 1
          %s169 = smul.addr %s168, 8
          %s170 = scalar_lea.vmem [#allocation5], %s169
          %s172 = ssub.s32 128, 128
          %173 = vsyncadd %s167, %s172
          %s174 = smul.addr %s22, 128
          %s175 = scalar_lea.hbm %s1, %s174
          %s177 = sshll.u32 %s170, 4
          %s178 = int_to_ptr.vmem [resolvable:$true] %s177
          %180 = dma.hbm_to_vmem [thread:$0]  %s175, 128, %s178, %s167
        $region24: #{tpu_custom_call.1} parent=15 // pred_fallthru
          _
      $region16: #{tpu_custom_call.1} parent=5 // pred_fallthru
        _
      %p181 = scmp.le.s32.totalorder 1, %s22
      %p182 = scmp.lt.s32.totalorder %s22, 3
      %p183 = pnand %p181, %p182
      %p184 = pneg %p183
      // Predicated region
      $region25: #{tpu_custom_call.1} parent=5 // pred_check
        _
      $region26: #{tpu_custom_call.1} parent=5 // pred_check_branch
        %186 = sbr.rel (%p183) target = $region28
      $region27: #{tpu_custom_call.1} parent=5 // pred_region
        %s187 = ssub.s32 %s22, 1
        %s188 = sand.u32 %s35, 1
        %s189 = scalar_lea.sflag [#allocation3], %s188
        %s190 = sand.u32 %s35, 1
        %s191 = smul.addr %s190, 8
        %s192 = scalar_lea.vmem [#allocation2], %s191
        // Predicated region
        $region29: #{tpu_custom_call.1} parent=27 // pred_check
          %p193 = pneg %p48
        $region30: #{tpu_custom_call.1} parent=27 // pred_check_branch
          %195 = sbr.rel (%p193) target = $region32
        $region31: #{tpu_custom_call.1} parent=27 // pred_region
          %196 = dma.done %s189, 128
        $region32: #{tpu_custom_call.1} parent=27 // pred_fallthru
          _
        %s197 = sand.u32 %s61, 1
        %s198 = scalar_lea.sflag [#allocation6], %s197
        %s199 = sand.u32 %s61, 1
        %s200 = smul.addr %s199, 8
        %s201 = scalar_lea.vmem [#allocation5], %s200
        // Predicated region
        $region33: #{tpu_custom_call.1} parent=27 // pred_check
          %p202 = pneg %p74
        $region34: #{tpu_custom_call.1} parent=27 // pred_check_branch
          %204 = sbr.rel (%p202) target = $region36
        $region35: #{tpu_custom_call.1} parent=27 // pred_region
          %205 = dma.done %s198, 128
        $region36: #{tpu_custom_call.1} parent=27 // pred_fallthru
          _
        %s206 = sand.u32 %s35, 1
        %s207 = scalar_lea.sflag [#allocation3], %s206
        %s208 = sand.u32 %s35, 1
        %s209 = smul.addr %s208, 8
        %s210 = scalar_lea.vmem [#allocation2], %s209
        %p211 = pneg %p48
        %p212 = pneg %p45
        %s213 = sand.u32 %s61, 1
        %s214 = scalar_lea.sflag [#allocation6], %s213
        %s215 = sand.u32 %s61, 1
        %s216 = smul.addr %s215, 8
        %s217 = scalar_lea.vmem [#allocation5], %s216
        %p218 = pneg %p74
        %p219 = pneg %p71
        %p220 = pneg %p100
        %p221 = pneg %p97
        %s222 = sand.u32 %s87, 1
        %s223 = scalar_lea.sflag [#allocation4], %s222
        %s224 = sand.u32 %s87, 1
        %s225 = smul.addr %s224, 8
        %s226 = scalar_lea.vmem [#allocation7], %s225
        %p227 = pneg %p126
        %p228 = pneg %p123
        %s229 = sand.u32 %s113, 1
        %s230 = scalar_lea.sflag [#allocation9], %s229
        %s231 = sand.u32 %s113, 1
        %s232 = smul.addr %s231, 8
        %s233 = scalar_lea.vmem [#allocation8], %s232
        %v234 = vld [vmem:[%s192] sm:$0xff]
        %v235 = vmul.f32 %v234, 0.5
        %v236 = vmul.f32 %v234, 0.70710677
        %v237 = verf.f32.pop %v236
        %v238 = vadd.f32 %v237, 1.0
        %v239 = vmul.f32 %v235, %v238
        %240 = vst [vmem:[%s226] sm:$0xff] %v239
        %v241 = vld [vmem:[%s201] sm:$0xff]
        %v242 = vmul.f32 %v241, 0.5
        %v243 = vmul.f32 %v241, 0.70710677
        %v244 = verf.f32.pop %v243
        %v245 = vadd.f32 %v244, 1.0
        %v246 = vmul.f32 %v242, %v245
        %247 = vst [vmem:[%s233] sm:$0xff] %v246
        %s248 = sand.u32 %s87, 1
        %s249 = scalar_lea.sflag [#allocation4], %s248
        %s250 = sand.u32 %s87, 1
        %s251 = smul.addr %s250, 8
        %s252 = scalar_lea.vmem [#allocation7], %s251
        %s253 = sand.u32 %s113, 1
        %s254 = scalar_lea.sflag [#allocation9], %s253
        %s255 = sand.u32 %s113, 1
        %s256 = smul.addr %s255, 8
        %s257 = scalar_lea.vmem [#allocation8], %s256
        // Predicated region
        $region37: #{tpu_custom_call.1} parent=27 // pred_check
          %p258 = pneg %p97
        $region38: #{tpu_custom_call.1} parent=27 // pred_check_branch
          %260 = sbr.rel (%p258) target = $region40
        $region39: #{tpu_custom_call.1} parent=27 // pred_region
          %s262 = ssub.s32 128, 128
          %263 = vsyncadd %s249, %s262
          %s264 = smul.addr %s27, 128
          %s265 = scalar_lea.hbm %s2, %s264
          %s267 = sshll.u32 %s252, 4
          %s268 = int_to_ptr.vmem [resolvable:$true] %s267
          %270 = dma.vmem_to_hbm [thread:$0]  %s268, 128, %s265, %s249
        $region40: #{tpu_custom_call.1} parent=27 // pred_fallthru
          _
        // Predicated region
        $region41: #{tpu_custom_call.1} parent=27 // pred_check
          %p271 = pneg %p123
        $region42: #{tpu_custom_call.1} parent=27 // pred_check_branch
          %273 = sbr.rel (%p271) target = $region44
        $region43: #{tpu_custom_call.1} parent=27 // pred_region
          %s275 = ssub.s32 128, 128
          %276 = vsyncadd %s254, %s275
          %s277 = smul.addr %s27, 128
          %s278 = scalar_lea.hbm %s3, %s277
          %s280 = sshll.u32 %s257, 4
          %s281 = int_to_ptr.vmem [resolvable:$true] %s280
          %283 = dma.vmem_to_hbm [thread:$0]  %s281, 128, %s278, %s254
        $region44: #{tpu_custom_call.1} parent=27 // pred_fallthru
          _
      $region28: #{tpu_custom_call.1} parent=5 // pred_fallthru
        _
      %p284 = scmp.le.s32.totalorder 2, %s22
      // Predicated region
      $region45: #{tpu_custom_call.1} parent=5 // pred_check
        %p285 = pneg %p284
      $region46: #{tpu_custom_call.1} parent=5 // pred_check_branch
        %287 = sbr.rel (%p285) target = $region48
      $region47: #{tpu_custom_call.1} parent=5 // pred_region
        %s288 = ssub.s32 %s22, 2
        // Predicated region
        $region49: #{tpu_custom_call.1} parent=47 // pred_check
          %p289 = pneg %p103
        $region50: #{tpu_custom_call.1} parent=47 // pred_check_branch
          %291 = sbr.rel (%p289) target = $region52
        $region51: #{tpu_custom_call.1} parent=47 // pred_region
          %s292 = sand.u32 %s88, 1
          %s293 = scalar_lea.sflag [#allocation4], %s292
          %s294 = sand.u32 %s88, 1
          %s295 = smul.addr %s294, 8
          %s296 = scalar_lea.vmem [#allocation7], %s295
          %297 = dma.done %s293, 128
        $region52: #{tpu_custom_call.1} parent=47 // pred_fallthru
          _
        // Predicated region
        $region53: #{tpu_custom_call.1} parent=47 // pred_check
          %p298 = pneg %p129
        $region54: #{tpu_custom_call.1} parent=47 // pred_check_branch
          %300 = sbr.rel (%p298) target = $region56
        $region55: #{tpu_custom_call.1} parent=47 // pred_region
          %s301 = sand.u32 %s114, 1
          %s302 = scalar_lea.sflag [#allocation9], %s301
          %s303 = sand.u32 %s114, 1
          %s304 = smul.addr %s303, 8
          %s305 = scalar_lea.vmem [#allocation8], %s304
          %306 = dma.done %s302, 128
        $region56: #{tpu_custom_call.1} parent=47 // pred_fallthru
          _
      $region48: #{tpu_custom_call.1} parent=5 // pred_fallthru
        _
    $region6: #{tpu_custom_call.1} parent=1 // loop_footer
      %s26 = sadd.s32 1, %s22
    $region7: #{tpu_custom_call.1} parent=1 // loop_footer_branch
      %21 = sbr.rel target = $region3
    $region8: #{tpu_custom_call.1} parent=1 // loop_exit
      _
    %307 = vsyncpa [#allocation3], 1
    %s308 = scalar_lea.sflag [#allocation3], 1
    %309 = vsyncpa %s308, 1
    %310 = vsyncpa [#allocation6], 1
    %s311 = scalar_lea.sflag [#allocation6], 1
    %312 = vsyncpa %s311, 1
    %313 = vsyncpa [#allocation4], 1
    %s314 = scalar_lea.sflag [#allocation4], 1
    %315 = vsyncpa %s314, 1
    %316 = vsyncpa [#allocation9], 1
    %s317 = scalar_lea.sflag [#allocation9], 1
    %318 = vsyncpa %s317, 1

</llo_original>
